<compile_context>
chip_gen: v7x
topology: tpu7x:2x2x1
jax: 0.10.0
libtpu: 0.0.40
codegen_flags: <defaults>
</compile_context>

<pallas_src>
import functools
import math

import jax
import jax.numpy as jnp
from jax.experimental import pallas as pl
from jax.experimental.pallas import tpu as pltpu

# --- module hyperparameters (from the PyTorch source) ---
BLOCK_SIZE = 8        # block_size (max sequence length / tril size)
N_EMBD = 64           # n_embd
NUM_HEADS = 4
HEAD_SIZE = N_EMBD // NUM_HEADS  # 16, so head_size * num_heads == n_embd


def _mha_kernel(x_ref, wqkv_ref, wo_ref, bo_ref, o_ref, *, seq_len):
    """One batch tile of TB elements per grid step, rows flattened to (TB*T, C).

    x_ref    : (TB*T, C)  bf16
    wqkv_ref : (C, 3*C)   bf16, columns ordered [Q heads | K heads | V heads]
    wo_ref   : (H*hs, C)  bf16 (pre-transposed output projection)
    bo_ref   : (1, C)     f32
    o_ref    : (TB*T, C)  f32
    """
    R, C = x_ref.shape
    T = seq_len
    TB = R // T
    H, hs = NUM_HEADS, HEAD_SIZE
    scale = hs ** -0.5

    # Fused QKV projection: one (R, C) x (C, 3C) MXU matmul, bf16 in / f32 acc.
    qkv = jnp.dot(x_ref[...], wqkv_ref[...],
                  preferred_element_type=jnp.float32).astype(jnp.bfloat16)

    # Head split into a single head-major batch (H*TB, T, hs) so the whole
    # attention runs as ONE batched dot_general pair + ONE softmax chain.
    def gather_heads(base):
        return jnp.concatenate(
            [qkv[:, base + h * hs: base + (h + 1) * hs].reshape(TB, T, hs)
             for h in range(H)],
            axis=0)

    q = gather_heads(0)
    k = gather_heads(C)
    v = gather_heads(2 * C)

    # Causal additive mask, built once per grid step.
    row = jax.lax.broadcasted_iota(jnp.int32, (T, T), 0)
    col = jax.lax.broadcasted_iota(jnp.int32, (T, T), 1)
    neg_mask = jnp.where(row >= col, 0.0, -jnp.inf).astype(jnp.float32)[None]

    # Scores for all (batch, head) pairs in one batched matmul.
    s = jnp.einsum('bqd,bkd->bqk', q, k,
                   preferred_element_type=jnp.float32) * scale + neg_mask

    # Numerically-stable softmax over the key axis (single chain for all heads).
    m = jnp.max(s, axis=-1, keepdims=True)
    e = jnp.exp(s - m)
    denom = jnp.sum(e, axis=-1, keepdims=True)
    p = (e * pl.reciprocal(denom, approx=True)).astype(jnp.bfloat16)

    # PV for all (batch, head) pairs in one batched matmul.
    o = jnp.einsum('bqk,bkd->bqd', p, v,
                   preferred_element_type=jnp.float32).astype(jnp.bfloat16)

    # Merge heads back on the lane axis -> single K=64 output projection + bias.
    cat = jnp.concatenate([o[h * TB:(h + 1) * TB] for h in range(H)],
                          axis=-1).reshape(R, C)
    out = jnp.dot(cat, wo_ref[...],
                  preferred_element_type=jnp.float32) + bo_ref[...]
    o_ref[...] = out.astype(o_ref.dtype)


def multi_head_attention(x, wq, wk, wv, wo, bo, *, tb_max=64,
                         vmem_limit_bytes=None):
    """x: (B, T, C) float32 -> (B, T, C) float32.

    wq/wk/wv: (H, head_size, C) PyTorch nn.Linear (out, in) layout, no bias.
    wo: (C, H*head_size), bo: (C,).
    """
    B, T, C = x.shape
    assert C == N_EMBD and T <= BLOCK_SIZE

    # --- one-time wrapper-side weight prep (outside the kernel hot loop) ---
    # Fused, pre-transposed QKV weight (C, 3C), columns [Q | K | V], hs-inner.
    # Weights cast to bf16 for the MXU (f32 accumulation in-kernel).
    wqkv = jnp.concatenate([wq, wk, wv], axis=0).reshape(3 * C, C).T
    wqkv = wqkv.astype(jnp.bfloat16)
    wo_t = wo.T.astype(jnp.bfloat16)               # (H*hs, C)
    bo2d = bo.reshape(1, C).astype(jnp.float32)

    # Batch tile. Default tb_max=64 keeps lane-padded intermediates well inside
    # the default scoped VMEM on v5e/v6e/v7x; raise tb_max/vmem_limit_bytes on
    # v6e for fewer grid steps. Prefer >=2 steps so both v7x TCs get work.
    tb_unit = 8 // math.gcd(T, 8)                  # keep block rows % 8 == 0
    TB = max(1, min(tb_max, pl.cdiv(B, 2)))
    TB = ((TB + tb_unit - 1) // tb_unit) * tb_unit
    n_steps = pl.cdiv(B, TB)
    B_pad = n_steps * TB

    xb = x.astype(jnp.bfloat16)
    if B_pad != B:
        # Zero-padded rows produce harmless finite garbage that is sliced off.
        xb = jnp.pad(xb, ((0, B_pad - B), (0, 0), (0, 0)))
    x2d = xb.reshape(B_pad * T, C)                 # flat 2-D -> contiguous DMA

    grid_spec = pltpu.PrefetchScalarGridSpec(
        num_scalar_prefetch=0,
        grid=(n_steps,),
        in_specs=[
            pl.BlockSpec((TB * T, C), lambda b: (b, 0)),   # x tile (rows)
            pl.BlockSpec((C, 3 * C), lambda b: (0, 0)),    # fused QKV weight
            pl.BlockSpec((C, C), lambda b: (0, 0)),        # output proj weight
            pl.BlockSpec((1, C), lambda b: (0, 0)),        # output proj bias
        ],
        out_specs=pl.BlockSpec((TB * T, C), lambda b: (b, 0)),
    )

    out = pl.pallas_call(
        functools.partial(_mha_kernel, seq_len=T),
        out_shape=jax.ShapeDtypeStruct((B_pad * T, C), jnp.float32),
        grid_spec=grid_spec,
        compiler_params=pltpu.CompilerParams(
            dimension_semantics=("parallel",),
            vmem_limit_bytes=vmem_limit_bytes),
    )(x2d, wqkv, wo_t, bo2d)
    return out.reshape(B_pad, T, C)[:B]


def _reference(x, wq, wk, wv, wo, bo):
    """Pure-JAX f32 reference mirroring the PyTorch forward (eval mode)."""
    B, T, C = x.shape
    scale = HEAD_SIZE ** -0.5
    tril = jnp.tril(jnp.ones((T, T)))
    outs = []
    for h in range(NUM_HEADS):
        q = x @ wq[h].T
        k = x @ wk[h].T
        v = x @ wv[h].T
        wei = (q @ jnp.swapaxes(k, -2, -1)) * scale
        wei = jnp.where(tril == 0, -jnp.inf, wei)
        wei = jax.nn.softmax(wei, axis=-1)
        outs.append(wei @ v)
    cat = jnp.concatenate(outs, axis=-1)
    return cat @ wo.T + bo


if __name__ == "__main__":
    key = jax.random.PRNGKey(0)
    kx, kq, kk, kv, kw, kb = jax.random.split(key, 6)

    B, T, C = 2, BLOCK_SIZE, N_EMBD
    x = jax.random.normal(kx, (B, T, C), dtype=jnp.float32)

    # Deterministic parameter init (uniform, PyTorch-Linear-like scale).
    bound_in = 1.0 / (C ** 0.5)
    wq = jax.random.uniform(kq, (NUM_HEADS, HEAD_SIZE, C), jnp.float32, -bound_in, bound_in)
    wk = jax.random.uniform(kk, (NUM_HEADS, HEAD_SIZE, C), jnp.float32, -bound_in, bound_in)
    wv = jax.random.uniform(kv, (NUM_HEADS, HEAD_SIZE, C), jnp.float32, -bound_in, bound_in)
    bound_p = 1.0 / ((NUM_HEADS * HEAD_SIZE) ** 0.5)
    wo = jax.random.uniform(kw, (C, NUM_HEADS * HEAD_SIZE), jnp.float32, -bound_p, bound_p)
    bo = jax.random.uniform(kb, (C,), jnp.float32, -bound_p, bound_p)

    out = multi_head_attention(x, wq, wk, wv, wo, bo)
    jax.block_until_ready(out)

    ref = _reference(x, wq, wk, wv, wo, bo)
    assert out.shape == (B, T, C)
    # bf16 MXU operands + approx reciprocal in the softmax shift numerics
    # slightly vs. the f32 reference -> loosened tolerance.
    assert jnp.allclose(out, ref, atol=2e-2, rtol=2e-2), "mismatch vs reference"

    print("KERNEL_OK")
</pallas_src>

<mosaic_0001>
module attributes {stable_mosaic.version = 11 : i64} {
  func.func @_mha_kernel(%arg0: i32, %arg1: memref<8x64xbf16, #tpu.memory_space<vmem>>, %arg2: memref<64x192xbf16, #tpu.memory_space<vmem>>, %arg3: memref<64x64xbf16, #tpu.memory_space<vmem>>, %arg4: memref<1x64xf32, #tpu.memory_space<vmem>>, %arg5: memref<8x64xf32, #tpu.memory_space<vmem>>) attributes {dimension_semantics = [#tpu.dimension_semantics<parallel>], iteration_bounds = array<i64: 2>, scalar_prefetch = 0 : i64, scratch_operands = 0 : i64, tpu.core_type = #tpu.core_type<tc>, window_params = [{transform_indices = @transform_0, window_bounds = array<i64: 8, 64>}, {pipeline_mode = #tpu.pipeline_mode<synchronous>, transform_indices = @transform_1, window_bounds = array<i64: 64, 192>}, {pipeline_mode = #tpu.pipeline_mode<synchronous>, transform_indices = @transform_2, window_bounds = array<i64: 64, 64>}, {pipeline_mode = #tpu.pipeline_mode<synchronous>, transform_indices = @transform_3, window_bounds = array<i64: 1, 64>}, {transform_indices = @transform_4, window_bounds = array<i64: 8, 64>}]} {
    %c0 = arith.constant 0 : index
    %c0_0 = arith.constant 0 : index
    %0 = vector.load %arg1[%c0, %c0_0] : memref<8x64xbf16, #tpu.memory_space<vmem>>, vector<8x64xbf16>
    %c0_1 = arith.constant 0 : index
    %c0_2 = arith.constant 0 : index
    %1 = vector.load %arg2[%c0_1, %c0_2] : memref<64x192xbf16, #tpu.memory_space<vmem>>, vector<64x192xbf16>
    %cst = arith.constant dense<0.000000e+00> : vector<8x192xf32>
    %2 = tpu.matmul %0, %1, %cst {dimension_numbers = #tpu.dot_dimension_numbers<[1], [0], [0], [1], [0, 0, 1, 1], [], []>} : vector<8x64xbf16>, vector<64x192xbf16>, vector<8x192xf32> -> vector<8x192xf32>
    %3 = arith.truncf %2 : vector<8x192xf32> to vector<8x192xbf16>
    %4 = vector.extract_strided_slice %3 {offsets = [0, 0], sizes = [8, 16], strides = [1, 1]} : vector<8x192xbf16> to vector<8x16xbf16>
    %5 = vector.shape_cast %4 : vector<8x16xbf16> to vector<1x8x16xbf16>
    %6 = vector.extract_strided_slice %3 {offsets = [0, 16], sizes = [8, 16], strides = [1, 1]} : vector<8x192xbf16> to vector<8x16xbf16>
    %7 = vector.shape_cast %6 : vector<8x16xbf16> to vector<1x8x16xbf16>
    %8 = vector.extract_strided_slice %3 {offsets = [0, 32], sizes = [8, 16], strides = [1, 1]} : vector<8x192xbf16> to vector<8x16xbf16>
    %9 = vector.shape_cast %8 : vector<8x16xbf16> to vector<1x8x16xbf16>
    %10 = vector.extract_strided_slice %3 {offsets = [0, 48], sizes = [8, 16], strides = [1, 1]} : vector<8x192xbf16> to vector<8x16xbf16>
    %11 = vector.shape_cast %10 : vector<8x16xbf16> to vector<1x8x16xbf16>
    %12 = tpu.concatenate %5, %7, %9, %11 in 0 : vector<1x8x16xbf16>, vector<1x8x16xbf16>, vector<1x8x16xbf16>, vector<1x8x16xbf16> -> vector<4x8x16xbf16>
    %13 = vector.extract_strided_slice %3 {offsets = [0, 64], sizes = [8, 16], strides = [1, 1]} : vector<8x192xbf16> to vector<8x16xbf16>
    %14 = vector.shape_cast %13 : vector<8x16xbf16> to vector<1x8x16xbf16>
    %15 = vector.extract_strided_slice %3 {offsets = [0, 80], sizes = [8, 16], strides = [1, 1]} : vector<8x192xbf16> to vector<8x16xbf16>
    %16 = vector.shape_cast %15 : vector<8x16xbf16> to vector<1x8x16xbf16>
    %17 = vector.extract_strided_slice %3 {offsets = [0, 96], sizes = [8, 16], strides = [1, 1]} : vector<8x192xbf16> to vector<8x16xbf16>
    %18 = vector.shape_cast %17 : vector<8x16xbf16> to vector<1x8x16xbf16>
    %19 = vector.extract_strided_slice %3 {offsets = [0, 112], sizes = [8, 16], strides = [1, 1]} : vector<8x192xbf16> to vector<8x16xbf16>
    %20 = vector.shape_cast %19 : vector<8x16xbf16> to vector<1x8x16xbf16>
    %21 = tpu.concatenate %14, %16, %18, %20 in 0 : vector<1x8x16xbf16>, vector<1x8x16xbf16>, vector<1x8x16xbf16>, vector<1x8x16xbf16> -> vector<4x8x16xbf16>
    %22 = vector.extract_strided_slice %3 {offsets = [0, 128], sizes = [8, 16], strides = [1, 1]} : vector<8x192xbf16> to vector<8x16xbf16>
    %23 = vector.shape_cast %22 : vector<8x16xbf16> to vector<1x8x16xbf16>
    %24 = vector.extract_strided_slice %3 {offsets = [0, 144], sizes = [8, 16], strides = [1, 1]} : vector<8x192xbf16> to vector<8x16xbf16>
    %25 = vector.shape_cast %24 : vector<8x16xbf16> to vector<1x8x16xbf16>
    %26 = vector.extract_strided_slice %3 {offsets = [0, 160], sizes = [8, 16], strides = [1, 1]} : vector<8x192xbf16> to vector<8x16xbf16>
    %27 = vector.shape_cast %26 : vector<8x16xbf16> to vector<1x8x16xbf16>
    %28 = vector.extract_strided_slice %3 {offsets = [0, 176], sizes = [8, 16], strides = [1, 1]} : vector<8x192xbf16> to vector<8x16xbf16>
    %29 = vector.shape_cast %28 : vector<8x16xbf16> to vector<1x8x16xbf16>
    %30 = tpu.concatenate %23, %25, %27, %29 in 0 : vector<1x8x16xbf16>, vector<1x8x16xbf16>, vector<1x8x16xbf16>, vector<1x8x16xbf16> -> vector<4x8x16xbf16>
    %31 = tpu.iota {dimensions = array<i32: 0>} : vector<8x8xi32>
    %32 = tpu.iota {dimensions = array<i32: 1>} : vector<8x8xi32>
    %33 = arith.cmpi sge, %31, %32 : vector<8x8xi32>
    %cst_3 = arith.constant 0.000000e+00 : f32
    %cst_4 = arith.constant 0xFF800000 : f32
    %34 = vector.broadcast %cst_3 : f32 to vector<8x8xf32>
    %35 = vector.broadcast %cst_4 : f32 to vector<8x8xf32>
    %36 = arith.select %33, %34, %35 : vector<8x8xi1>, vector<8x8xf32>
    %37 = vector.shape_cast %36 : vector<8x8xf32> to vector<1x8x8xf32>
    "tpu.trace_start"() <{level = 10 : i32, message = "bqd,bkd->bqk"}> : () -> ()
    %cst_5 = arith.constant dense<0.000000e+00> : vector<4x8x8xf32>
    %38 = tpu.matmul %12, %21, %cst_5 {dimension_numbers = #tpu.dot_dimension_numbers<[2], [2], [1], [1], [0, 0, 0, 1, 1, 1], [0], [0]>} : vector<4x8x16xbf16>, vector<4x8x16xbf16>, vector<4x8x8xf32> -> vector<4x8x8xf32>
    "tpu.trace_stop"() : () -> ()
    %cst_6 = arith.constant 2.500000e-01 : f32
    %39 = vector.broadcast %cst_6 : f32 to vector<4x8x8xf32>
    %40 = arith.mulf %38, %39 : vector<4x8x8xf32>
    %41 = vector.broadcast %37 : vector<1x8x8xf32> to vector<4x8x8xf32>
    %42 = arith.addf %40, %41 : vector<4x8x8xf32>
    %cst_7 = arith.constant dense<0xFF800000> : vector<4x8xf32>
    %43 = vector.multi_reduction <maximumf>, %42, %cst_7 [2] : vector<4x8x8xf32> to vector<4x8xf32>
    %44 = vector.shape_cast %43 : vector<4x8xf32> to vector<4x8x1xf32>
    %45 = vector.broadcast %44 : vector<4x8x1xf32> to vector<4x8x8xf32>
    %46 = arith.subf %42, %45 : vector<4x8x8xf32>
    %47 = math.exp %46 : vector<4x8x8xf32>
    %cst_8 = arith.constant dense<0.000000e+00> : vector<4x8xf32>
    %48 = vector.multi_reduction <add>, %47, %cst_8 [2] : vector<4x8x8xf32> to vector<4x8xf32>
    %49 = vector.shape_cast %48 : vector<4x8xf32> to vector<4x8x1xf32>
    %50 = tpu.reciprocal %49 {approx = true} : vector<4x8x1xf32> -> vector<4x8x1xf32>
    %51 = vector.broadcast %50 : vector<4x8x1xf32> to vector<4x8x8xf32>
    %52 = arith.mulf %47, %51 : vector<4x8x8xf32>
    %53 = arith.truncf %52 : vector<4x8x8xf32> to vector<4x8x8xbf16>
    "tpu.trace_start"() <{level = 10 : i32, message = "bqk,bkd->bqd"}> : () -> ()
    %cst_9 = arith.constant dense<0.000000e+00> : vector<4x8x16xf32>
    %54 = tpu.matmul %53, %30, %cst_9 {dimension_numbers = #tpu.dot_dimension_numbers<[2], [1], [1], [2], [0, 0, 0, 1, 1, 2], [0], [0]>} : vector<4x8x8xbf16>, vector<4x8x16xbf16>, vector<4x8x16xf32> -> vector<4x8x16xf32>
    "tpu.trace_stop"() : () -> ()
    %55 = arith.truncf %54 : vector<4x8x16xf32> to vector<4x8x16xbf16>
    %56 = vector.extract_strided_slice %55 {offsets = [0, 0, 0], sizes = [1, 8, 16], strides = [1, 1, 1]} : vector<4x8x16xbf16> to vector<1x8x16xbf16>
    %57 = vector.extract_strided_slice %55 {offsets = [1, 0, 0], sizes = [1, 8, 16], strides = [1, 1, 1]} : vector<4x8x16xbf16> to vector<1x8x16xbf16>
    %58 = vector.extract_strided_slice %55 {offsets = [2, 0, 0], sizes = [1, 8, 16], strides = [1, 1, 1]} : vector<4x8x16xbf16> to vector<1x8x16xbf16>
    %59 = vector.extract_strided_slice %55 {offsets = [3, 0, 0], sizes = [1, 8, 16], strides = [1, 1, 1]} : vector<4x8x16xbf16> to vector<1x8x16xbf16>
    %60 = tpu.concatenate %56, %57, %58, %59 in 2 : vector<1x8x16xbf16>, vector<1x8x16xbf16>, vector<1x8x16xbf16>, vector<1x8x16xbf16> -> vector<1x8x64xbf16>
    %61 = vector.shape_cast %60 : vector<1x8x64xbf16> to vector<8x64xbf16>
    %c0_10 = arith.constant 0 : index
    %c0_11 = arith.constant 0 : index
    %62 = vector.load %arg3[%c0_10, %c0_11] : memref<64x64xbf16, #tpu.memory_space<vmem>>, vector<64x64xbf16>
    %cst_12 = arith.constant dense<0.000000e+00> : vector<8x64xf32>
    %63 = tpu.matmul %61, %62, %cst_12 {dimension_numbers = #tpu.dot_dimension_numbers<[1], [0], [0], [1], [0, 0, 1, 1], [], []>} : vector<8x64xbf16>, vector<64x64xbf16>, vector<8x64xf32> -> vector<8x64xf32>
    %c0_13 = arith.constant 0 : index
    %c0_14 = arith.constant 0 : index
    %64 = vector.load %arg4[%c0_13, %c0_14] : memref<1x64xf32, #tpu.memory_space<vmem>>, vector<1x64xf32>
    %65 = vector.broadcast %64 : vector<1x64xf32> to vector<8x64xf32>
    %66 = arith.addf %63, %65 : vector<8x64xf32>
    %c0_15 = arith.constant 0 : index
    %c0_16 = arith.constant 0 : index
    %67 = vector.load %arg5[%c0_15, %c0_16] : memref<8x64xf32, #tpu.memory_space<vmem>>, vector<8x64xf32>
    tpu.vector_store %arg5[%c0_15, %c0_16], %66 {strides = array<i32>} : memref<8x64xf32, #tpu.memory_space<vmem>>, vector<8x64xf32>,
    return
  }
  func.func @transform_0(%arg0: i32) -> (i32, i32) {
    %c0_i32 = arith.constant 0 : i32
    %c0_i32_0 = arith.constant 0 : i32
    return %arg0, %c0_i32 : i32, i32
  }
  func.func @transform_1(%arg0: i32) -> (i32, i32) {
    %c0_i32 = arith.constant 0 : i32
    %c0_i32_0 = arith.constant 0 : i32
    %c0_i32_1 = arith.constant 0 : i32
    return %c0_i32, %c0_i32_0 : i32, i32
  }
  func.func @transform_2(%arg0: i32) -> (i32, i32) {
    %c0_i32 = arith.constant 0 : i32
    %c0_i32_0 = arith.constant 0 : i32
    %c0_i32_1 = arith.constant 0 : i32
    return %c0_i32, %c0_i32_0 : i32, i32
  }
  func.func @transform_3(%arg0: i32) -> (i32, i32) {
    %c0_i32 = arith.constant 0 : i32
    %c0_i32_0 = arith.constant 0 : i32
    %c0_i32_1 = arith.constant 0 : i32
    return %c0_i32, %c0_i32_0 : i32, i32
  }
  func.func @transform_4(%arg0: i32) -> (i32, i32) {
    %c0_i32 = arith.constant 0 : i32
    %c0_i32_0 = arith.constant 0 : i32
    return %arg0, %c0_i32 : i32, i32
  }
}

</mosaic_0001>

<llo_original>
// kernel: tpu_custom_call.1
$region0: #{tpu_custom_call.1}
  #allocation0 [shape = 'u32[]', space=smem, size = 0x4, offset = 0x4, fixed_abs, tag = 'smem constant byte address 0x4 - core index']
  #allocation1 [shape = 'u32[144,128]{1,0:T(1,128)}', space=vmem, size = 0x12000, scoped, tag = 'internal scratch']
  %s0 = inlined_call_operand.hbm [shape: bf16[16,64], index: 0, kind: input, shape index: {}]
  %s1 = inlined_call_operand.hbm [shape: bf16[64,192], index: 1, kind: input, shape index: {}]
  %s2 = inlined_call_operand.hbm [shape: bf16[64,64], index: 2, kind: input, shape index: {}]
  %s3 = inlined_call_operand.vmem [shape: f32[1,64], index: 3, kind: input, shape index: {}]
  %s4 = inlined_call_operand.hbm [shape: f32[16,64], index: 4, kind: output, shape index: {}]
  %s5 = sld [smem:[#allocation0]]
  $region61: #{tpu_custom_call.1} parent=0
    _
  %s7 = ssub.s32 1, %s5
  %s8 = scalar_select 0, %s7, %s5
  $region1: #{tpu_custom_call.1} parent=0
    #allocation2 [shape = 'u8[4096]{0}', space=vmem, size = 0x1000, scoped, tag = 'input window, operand 0']
    #allocation3 [shape = 's32[2]{0}', space=sflag, size = 0x8, scoped, tag = 'scoped memory for tpu_custom_call.1']
    #allocation4 [shape = 's32[2]{0}', space=sflag, size = 0x8, scoped, tag = 'scoped memory for tpu_custom_call.1']
    #allocation5 [shape = 'u8[32768]{0}', space=vmem, size = 0x8000, scoped, tag = 'input window, operand 1, single buffered']
    #allocation6 [shape = 's32[1]{0}', space=sflag, size = 0x4, scoped, tag = 'scoped memory for tpu_custom_call.1']
    #allocation7 [shape = 'u8[16384]{0}', space=vmem, size = 0x4000, scoped, tag = 'input window, operand 2, single buffered']
    #allocation8 [shape = 'u8[8192]{0}', space=vmem, size = 0x2000, scoped, tag = 'output window, operand 0']
    %9 = vsyncpa [#allocation3], 0
    %s10 = scalar_lea.sflag [#allocation3], 1
    %11 = vsyncpa %s10, 0
    %12 = vsyncpa [#allocation6], 0
    %13 = vsyncpa [#allocation4], 0
    %s14 = scalar_lea.sflag [#allocation4], 1
    %15 = vsyncpa %s14, 0
    loop: start=0, step=1, limit=4
    $region2: #{tpu_custom_call.1} parent=1 // loop_pre_header
      _
    $region3: #{tpu_custom_call.1} parent=1 // loop_header
      %s17 = sphi 0, %s21
      %p18 = scmp.ge.s32.totalorder %s17, 4
      %s27 = sphi 0, %s29
      %s30 = sphi 0, %s27
      %s31 = sphi 0, %s30
      %s47 = sphi 0, %s31
      %s51 = sphi 0, %s51
      %s53 = sphi 0, %s51
      %s54 = sphi 0, %s53
      %s68 = sphi 0, %s54
      %s72 = sphi 0, %s72
      %s74 = sphi 0, %s72
      %s75 = sphi 0, %s74
      %s89 = sphi 0, %s75
      %s93 = sphi 0, %s93
      %s95 = sphi 0, %s93
      %s96 = sphi 0, %s95
      %s110 = sphi 0, %s96
      %s116 = sphi 0, %s118
      %s119 = sphi 0, %s116
      %s120 = sphi 0, %s119
      %s136 = sphi 0, %s120
    $region4: #{tpu_custom_call.1} parent=1 // loop_header_branch
      %20 = sbr.rel (%p18) target = $region8
    $region5: #{tpu_custom_call.1} parent=1 // loop_body
      %s22 = ssub.s32 %s17, 1
      %s23 = ssub.s32 %s17, 2
      %s24 = sadd.s32 %s17, 1
      %s25 = ssub.s32 %s17, %s24
      %p26 = scmp.eq.s32.totalorder %s25, 0
      %s28 = sadd.s32 %s27, 1
      %s29 = scalar_select %p26, %s27, %s28
      %p32 = pneg %p26
      %p33 = scmp.eq.s32.totalorder %s17, 1
      %p34 = por %p32, %p33
      %p35 = scmp.ne.s32.totalorder %s27, %s30
      %p36 = scmp.eq.s32.totalorder %s17, 0
      %p37 = por %p35, %p36
      %p38 = scmp.ne.s32.totalorder %s27, %s30
      %p39 = scmp.eq.s32.totalorder %s22, 1
      %p40 = por %p38, %p39
      %p41 = scmp.ne.s32.totalorder %s30, %s31
      %p42 = scmp.eq.s32.totalorder %s22, 0
      %p43 = por %p41, %p42
      %p44 = scmp.ne.s32.totalorder %s30, %s31
      %p45 = scmp.eq.s32.totalorder %s23, 1
      %p46 = por %p44, %p45
      %p48 = scmp.ne.s32.totalorder %s31, %s47
      %p49 = scmp.eq.s32.totalorder %s23, 0
      %p50 = por %p48, %p49
      %s52 = sadd.s32 %s51, 1
      %p55 = scmp.eq.s32.totalorder %s17, 1
      %p56 = scmp.ne.s32.totalorder %s51, %s53
      %p57 = scmp.eq.s32.totalorder %s17, 0
      %p58 = por %p56, %p57
      %p59 = scmp.ne.s32.totalorder %s51, %s53
      %p60 = scmp.eq.s32.totalorder %s22, 1
      %p61 = por %p59, %p60
      %p62 = scmp.ne.s32.totalorder %s53, %s54
      %p63 = scmp.eq.s32.totalorder %s22, 0
      %p64 = por %p62, %p63
      %p65 = scmp.ne.s32.totalorder %s53, %s54
      %p66 = scmp.eq.s32.totalorder %s23, 1
      %p67 = por %p65, %p66
      %p69 = scmp.ne.s32.totalorder %s54, %s68
      %p70 = scmp.eq.s32.totalorder %s23, 0
      %p71 = por %p69, %p70
      %s73 = sadd.s32 %s72, 1
      %p76 = scmp.eq.s32.totalorder %s17, 1
      %p77 = scmp.ne.s32.totalorder %s72, %s74
      %p78 = scmp.eq.s32.totalorder %s17, 0
      %p79 = por %p77, %p78
      %p80 = scmp.ne.s32.totalorder %s72, %s74
      %p81 = scmp.eq.s32.totalorder %s22, 1
      %p82 = por %p80, %p81
      %p83 = scmp.ne.s32.totalorder %s74, %s75
      %p84 = scmp.eq.s32.totalorder %s22, 0
      %p85 = por %p83, %p84
      %p86 = scmp.ne.s32.totalorder %s74, %s75
      %p87 = scmp.eq.s32.totalorder %s23, 1
      %p88 = por %p86, %p87
      %p90 = scmp.ne.s32.totalorder %s75, %s89
      %p91 = scmp.eq.s32.totalorder %s23, 0
      %p92 = por %p90, %p91
      %s94 = sadd.s32 %s93, 1
      %p97 = scmp.eq.s32.totalorder %s17, 1
      %p98 = scmp.ne.s32.totalorder %s93, %s95
      %p99 = scmp.eq.s32.totalorder %s17, 0
      %p100 = por %p98, %p99
      %p101 = scmp.ne.s32.totalorder %s93, %s95
      %p102 = scmp.eq.s32.totalorder %s22, 1
      %p103 = por %p101, %p102
      %p104 = scmp.ne.s32.totalorder %s95, %s96
      %p105 = scmp.eq.s32.totalorder %s22, 0
      %p106 = por %p104, %p105
      %p107 = scmp.ne.s32.totalorder %s95, %s96
      %p108 = scmp.eq.s32.totalorder %s23, 1
      %p109 = por %p107, %p108
      %p111 = scmp.ne.s32.totalorder %s96, %s110
      %p112 = scmp.eq.s32.totalorder %s23, 0
      %p113 = por %p111, %p112
      %s114 = ssub.s32 %s17, %s24
      %p115 = scmp.eq.s32.totalorder %s114, 0
      %s117 = sadd.s32 %s116, 1
      %s118 = scalar_select %p115, %s116, %s117
      %p121 = pneg %p115
      %p122 = scmp.eq.s32.totalorder %s17, 1
      %p123 = por %p121, %p122
      %p124 = scmp.ne.s32.totalorder %s116, %s119
      %p125 = scmp.eq.s32.totalorder %s17, 0
      %p126 = por %p124, %p125
      %p127 = scmp.ne.s32.totalorder %s116, %s119
      %p128 = scmp.eq.s32.totalorder %s22, 1
      %p129 = por %p127, %p128
      %p130 = scmp.ne.s32.totalorder %s119, %s120
      %p131 = scmp.eq.s32.totalorder %s22, 0
      %p132 = por %p130, %p131
      %p133 = scmp.ne.s32.totalorder %s119, %s120
      %p134 = scmp.eq.s32.totalorder %s23, 1
      %p135 = por %p133, %p134
      %p137 = scmp.ne.s32.totalorder %s120, %s136
      %p138 = scmp.eq.s32.totalorder %s23, 0
      %p139 = por %p137, %p138
      %p140 = scmp.le.s32.totalorder 1, %s17
      %p141 = scmp.lt.s32.totalorder %s17, 3
      %p142 = pnand %p140, %p141
      %p143 = pneg %p142
      // Predicated region
      $region9: #{tpu_custom_call.1} parent=5 // pred_check
        _
      $region10: #{tpu_custom_call.1} parent=5 // pred_check_branch
        %145 = sbr.rel (%p142) target = $region12
      $region11: #{tpu_custom_call.1} parent=5 // pred_region
        %s146 = ssub.s32 %s17, 1
        // Predicated region
        $region13: #{tpu_custom_call.1} parent=11 // pred_check
          %p147 = pneg %p64
        $region14: #{tpu_custom_call.1} parent=11 // pred_check_branch
          %149 = sbr.rel (%p147) target = $region16
        $region15: #{tpu_custom_call.1} parent=11 // pred_region
          %s151 = ssub.s32 1024, 1024
          %152 = vsyncadd [#allocation6], %s151
          %s153 = sshll.u32 [#allocation5], 4
          %s154 = int_to_ptr.vmem [resolvable:$true] %s153
          %159 = dma.hbm_to_vmem [thread:$0]  %s1, 1024, %s154, [#allocation6], 128, 128, 8
        $region16: #{tpu_custom_call.1} parent=11 // pred_fallthru
          _
        // Predicated region
        $region17: #{tpu_custom_call.1} parent=11 // pred_check
          %p160 = pneg %p85
        $region18: #{tpu_custom_call.1} parent=11 // pred_check_branch
          %162 = sbr.rel (%p160) target = $region20
        $region19: #{tpu_custom_call.1} parent=11 // pred_region
          %s164 = ssub.s32 512, 512
          %165 = vsyncadd [#allocation6], %s164
          %s166 = sshll.u32 [#allocation7], 4
          %s167 = int_to_ptr.vmem [resolvable:$true] %s166
          %172 = dma.hbm_to_vmem [thread:$0]  %s2, 512, %s167, [#allocation6], 64, 64, 4
        $region20: #{tpu_custom_call.1} parent=11 // pred_fallthru
          _
        // Predicated region
        $region21: #{tpu_custom_call.1} parent=11 // pred_check
          %p173 = pneg %p106
        $region22: #{tpu_custom_call.1} parent=11 // pred_check_branch
          %175 = sbr.rel (%p173) target = $region24
        $region23: #{tpu_custom_call.1} parent=11 // pred_region
          _
        $region24: #{tpu_custom_call.1} parent=11 // pred_fallthru
          _
      $region12: #{tpu_custom_call.1} parent=5 // pred_fallthru
        _
      %p176 = scmp.lt.s32.totalorder %s17, 2
      // Predicated region
      $region25: #{tpu_custom_call.1} parent=5 // pred_check
        %p177 = pneg %p176
      $region26: #{tpu_custom_call.1} parent=5 // pred_check_branch
        %179 = sbr.rel (%p177) target = $region28
      $region27: #{tpu_custom_call.1} parent=5 // pred_region
        // Predicated region
        $region29: #{tpu_custom_call.1} parent=27 // pred_check
          %p180 = pneg %p37
        $region30: #{tpu_custom_call.1} parent=27 // pred_check_branch
          %182 = sbr.rel (%p180) target = $region32
        $region31: #{tpu_custom_call.1} parent=27 // pred_region
          %s183 = sand.u32 %s27, 1
          %s184 = scalar_lea.sflag [#allocation3], %s183
          %s185 = sand.u32 %s27, 1
          %s186 = smul.addr %s185, 4
          %s187 = scalar_lea.vmem [#allocation2], %s186
          %s189 = ssub.s32 64, 64
          %190 = vsyncadd %s184, %s189
          %s191 = smul.addr %s17, 64
          %s192 = scalar_lea.hbm %s0, %s191
          %s194 = sshll.u32 %s187, 4
          %s195 = int_to_ptr.vmem [resolvable:$true] %s194
          %197 = dma.hbm_to_vmem [thread:$0]  %s192, 64, %s195, %s184
        $region32: #{tpu_custom_call.1} parent=27 // pred_fallthru
          _
      $region28: #{tpu_custom_call.1} parent=5 // pred_fallthru
        _
      %p198 = scmp.le.s32.totalorder 1, %s17
      %p199 = scmp.lt.s32.totalorder %s17, 3
      %p200 = pnand %p198, %p199
      %p201 = pneg %p200
      // Predicated region
      $region33: #{tpu_custom_call.1} parent=5 // pred_check
        _
      $region34: #{tpu_custom_call.1} parent=5 // pred_check_branch
        %203 = sbr.rel (%p200) target = $region36
      $region35: #{tpu_custom_call.1} parent=5 // pred_region
        %s204 = ssub.s32 %s17, 1
        %s205 = sand.u32 %s30, 1
        %s206 = scalar_lea.sflag [#allocation3], %s205
        %s207 = sand.u32 %s30, 1
        %s208 = smul.addr %s207, 4
        %s209 = scalar_lea.vmem [#allocation2], %s208
        // Predicated region
        $region37: #{tpu_custom_call.1} parent=35 // pred_check
          %p210 = pneg %p43
        $region38: #{tpu_custom_call.1} parent=35 // pred_check_branch
          %212 = sbr.rel (%p210) target = $region40
        $region39: #{tpu_custom_call.1} parent=35 // pred_region
          %213 = dma.done %s206, 64
        $region40: #{tpu_custom_call.1} parent=35 // pred_fallthru
          _
        // Predicated region
        $region41: #{tpu_custom_call.1} parent=35 // pred_check
          %p214 = pneg %p64
        $region42: #{tpu_custom_call.1} parent=35 // pred_check_branch
          %216 = sbr.rel (%p214) target = $region44
        $region43: #{tpu_custom_call.1} parent=35 // pred_region
          %217 = dma.done [#allocation6], 1024
        $region44: #{tpu_custom_call.1} parent=35 // pred_fallthru
          _
        // Predicated region
        $region45: #{tpu_custom_call.1} parent=35 // pred_check
          %p218 = pneg %p85
        $region46: #{tpu_custom_call.1} parent=35 // pred_check_branch
          %220 = sbr.rel (%p218) target = $region48
        $region47: #{tpu_custom_call.1} parent=35 // pred_region
          %221 = dma.done [#allocation6], 512
        $region48: #{tpu_custom_call.1} parent=35 // pred_fallthru
          _
        %s222 = sand.u32 %s30, 1
        %s223 = scalar_lea.sflag [#allocation3], %s222
        %s224 = sand.u32 %s30, 1
        %s225 = smul.addr %s224, 4
        %s226 = scalar_lea.vmem [#allocation2], %s225
        %p227 = pneg %p43
        %p228 = pneg %p40
        %p229 = pneg %p64
        %p230 = pneg %p61
        %p231 = pneg %p85
        %p232 = pneg %p82
        %p233 = pneg %p106
        %p234 = pneg %p103
        %p235 = pneg %p132
        %p236 = pneg %p129
        %s237 = sand.u32 %s119, 1
        %s238 = scalar_lea.sflag [#allocation4], %s237
        %s239 = sand.u32 %s119, 1
        %s240 = smul.addr %s239, 8
        %s241 = scalar_lea.vmem [#allocation8], %s240
        %v243 = vld [vmem:[%s209] sm:$0xf]
        %v244 = vld [vmem:[#allocation5] sm:$0xff]
        %v245 = vld [vmem:[#allocation5 + $0x8] sm:$0xff]
        %v246 = vld [vmem:[#allocation5 + $0x10] sm:$0xff]
        %v247 = vld [vmem:[#allocation5 + $0x18] sm:$0xff]
        %v248 = vld [vmem:[#allocation5 + $0x20] sm:$0xff]
        %v249 = vld [vmem:[#allocation5 + $0x28] sm:$0xff]
        %v250 = vld [vmem:[#allocation5 + $0x30] sm:$0xff]
        %v251 = vld [vmem:[#allocation5 + $0x38] sm:$0xff]
        %v260 = vunpack.c.l.b16 %v244
        %v261 = vunpack.c.h.b16 %v244
        %v262 = vunpack.c.l.b16 %v245
        %v263 = vunpack.c.h.b16 %v245
        %v264 = vunpack.c.l.b16 %v246
        %v265 = vunpack.c.h.b16 %v246
        %v266 = vunpack.c.l.b16 %v247
        %v267 = vunpack.c.h.b16 %v247
        %v268 = vunpack.c.l.b16 %v248
        %v269 = vunpack.c.h.b16 %v248
        %v270 = vunpack.c.l.b16 %v249
        %v271 = vunpack.c.h.b16 %v249
        %v272 = vunpack.c.l.b16 %v250
        %v273 = vunpack.c.h.b16 %v250
        %v274 = vunpack.c.l.b16 %v251
        %v275 = vunpack.c.h.b16 %v251
        %v276 = vpack.c.b16 %v262, %v260
        %v277 = vpack.c.b16 %v263, %v261
        %v278 = vpack.c.b16 %v266, %v264
        %v279 = vpack.c.b16 %v267, %v265
        %v280 = vpack.c.b16 %v270, %v268
        %v281 = vpack.c.b16 %v271, %v269
        %v282 = vpack.c.b16 %v274, %v272
        %v283 = vpack.c.b16 %v275, %v273
        %vm292 = vcmask 523264
        %v294 = vsel %vm292, %v243, 0
        %296 = vmatprep.subr.bf16.mxu0 %v277
        %297 = vmatpush1.bf16.msra.mxu0 %v276
        %298 = vmatprep.subr.bf16.mxu0 %v279
        %299 = vmatpush1.bf16.msra.mxu0 %v278
        %300 = vmatprep.subr.bf16.mxu0 %v281
        %301 = vmatpush1.bf16.msra.mxu0 %v280
        %302 = vmatprep.subr.bf16.mxu0 %v283
        %303 = vmatpush1.bf16.msra.mxu0 %v282
        %304 = vmatprep.subr.bf16.mxu0 0
        %305 = vmatpush1.bf16.msra.mxu0 0
        %306 = vmatprep.subr.bf16.mxu0 0
        %307 = vmatpush1.bf16.msra.mxu0 0
        %308 = vmatprep.subr.bf16.mxu0 0
        %309 = vmatpush1.bf16.msra.mxu0 0
        %310 = vmatprep.subr.bf16.mxu0 0
        %311 = vmatpush1.bf16.msra.mxu0 0
        %312 = vmatprep.subr.bf16.mxu0 0
        %313 = vmatpush1.bf16.msra.mxu0 0
        %314 = vmatprep.subr.bf16.mxu0 0
        %315 = vmatpush1.bf16.msra.mxu0 0
        %316 = vmatprep.subr.bf16.mxu0 0
        %317 = vmatpush1.bf16.msra.mxu0 0
        %318 = vmatprep.subr.bf16.mxu0 0
        %319 = vmatpush1.bf16.msra.mxu0 0
        %320 = vmatprep.subr.bf16.mxu0 0
        %321 = vmatpush1.bf16.msra.mxu0 0
        %322 = vmatprep.subr.bf16.mxu0 0
        %323 = vmatpush1.bf16.msra.mxu0 0
        %324 = vmatprep.subr.bf16.mxu0 0
        %325 = vmatpush1.bf16.msra.mxu0 0
        %326 = vmatprep.subr.bf16.mxu0 0
        %327 = vmatpush1.bf16.msra.mxu0 0
        %328 = vmatprep.mubr.bf16.mxu0 0
        %329 = vmatmul.mubr.bf16.gmra.mrb[0].mxu0 %v294
        %v330 = vpop.f32.mrb[0].mxu0
        %v331 = vadd.f32 0.0, %v330
        %v332 = vpop.f32.mrb[0].mxu0
        %v333 = vadd.f32 0.0, %v332
        %v334 = vpop.f32.mrb[0].mxu0
        %v335 = vpop.f32.mrb[0].mxu0
        %336 = vdwg.mxu0
        %v337 = vpack.c.bf16 %v331, %v331
        %v338 = vpack.c.bf16 %v333, %v333
        %340 = vrot.lane.b32.xlu0 %v337, 112
        %v341 = vpop.permute.xlu0 %340
        %342 = vrot.lane.b32.xlu0 %v337, 96
        %v343 = vpop.permute.xlu0 %342
        %344 = vrot.lane.b32.xlu0 %v337, 80
        %v345 = vpop.permute.xlu0 %344
        %347 = vrot.lane.b32.xlu0 %v338, 112
        %v348 = vpop.permute.xlu0 %347
        %349 = vrot.lane.b32.xlu0 %v338, 96
        %v350 = vpop.permute.xlu0 %349
        %351 = vrot.lane.b32.xlu0 %v338, 80
        %v352 = vpop.permute.xlu0 %351
        %v353 = vlaneseq
        %v354 = vshrl.u32 %v353, 7
        %v355 = vlaneseq
        %v356 = vand.u32 %v355, 127
        %vm357 = vcmp.ge.s32.totalorder %v354, %v356
        %v358 = vsel %vm357, 0.0, -inf
        %359 = vrot.lane.b32.xlu0 %v337, 64
        %v360 = vpop.permute.xlu0 %359
        %vm361 = vcmask 130048
        %v363 = vsel %vm361, %v337, 0
        %v366 = vsel %vm361, %v360, 0
        %368 = vmatprep.subr.bf16.mxu0 0
        %369 = vmatpush1.bf16.xpose.msra.mxu0 %v366
        %370 = vmatprep.subr.bf16.mxu0 0
        %371 = vmatpush1.bf16.xpose.msra.mxu0 0
        %372 = vmatprep.subr.bf16.mxu0 0
        %373 = vmatpush1.bf16.xpose.msra.mxu0 0
        %374 = vmatprep.subr.bf16.mxu0 0
        %375 = vmatpush1.bf16.xpose.msra.mxu0 0
        %376 = vmatprep.subr.bf16.mxu0 0
        %377 = vmatpush1.bf16.xpose.msra.mxu0 0
        %378 = vmatprep.subr.bf16.mxu0 0
        %379 = vmatpush1.bf16.xpose.msra.mxu0 0
        %380 = vmatprep.subr.bf16.mxu0 0
        %381 = vmatpush1.bf16.xpose.msra.mxu0 0
        %382 = vmatprep.subr.bf16.mxu0 0
        %383 = vmatpush1.bf16.xpose.msra.mxu0 0
        %384 = vmatprep.subr.bf16.mxu0 0
        %385 = vmatpush1.bf16.xpose.msra.mxu0 0
        %386 = vmatprep.subr.bf16.mxu0 0
        %387 = vmatpush1.bf16.xpose.msra.mxu0 0
        %388 = vmatprep.subr.bf16.mxu0 0
        %389 = vmatpush1.bf16.xpose.msra.mxu0 0
        %390 = vmatprep.subr.bf16.mxu0 0
        %391 = vmatpush1.bf16.xpose.msra.mxu0 0
        %392 = vmatprep.subr.bf16.mxu0 0
        %393 = vmatpush1.bf16.xpose.msra.mxu0 0
        %394 = vmatprep.subr.bf16.mxu0 0
        %395 = vmatpush1.bf16.xpose.msra.mxu0 0
        %396 = vmatprep.subr.bf16.mxu0 0
        %397 = vmatpush1.bf16.xpose.msra.mxu0 0
        %398 = vmatprep.subr.bf16.mxu0 0
        %399 = vmatpush1.bf16.xpose.msra.mxu0 0
        %400 = vmatprep.mubr.bf16.mxu0 0
        %401 = vmatmul.mubr.bf16.gmra.mrb[0].mxu0 %v363
        %v402 = vpop.f32.mrb[0].mxu0
        %v403 = vadd.f32 0.0, %v402
        %v404 = vpop.f32.mrb[0].mxu0
        %v405 = vpop.f32.mrb[0].mxu0
        %v406 = vpop.f32.mrb[0].mxu0
        %407 = vdwg.mxu0
        %408 = vrot.lane.b32.xlu0 %v341, 64
        %v409 = vpop.permute.xlu0 %408
        %v411 = vsel %vm361, %v341, 0
        %v414 = vsel %vm361, %v409, 0
        %416 = vmatprep.subr.bf16.mxu0 0
        %417 = vmatpush1.bf16.xpose.msra.mxu0 %v414
        %418 = vmatprep.subr.bf16.mxu0 0
        %419 = vmatpush1.bf16.xpose.msra.mxu0 0
        %420 = vmatprep.subr.bf16.mxu0 0
        %421 = vmatpush1.bf16.xpose.msra.mxu0 0
        %422 = vmatprep.subr.bf16.mxu0 0
        %423 = vmatpush1.bf16.xpose.msra.mxu0 0
        %424 = vmatprep.subr.bf16.mxu0 0
        %425 = vmatpush1.bf16.xpose.msra.mxu0 0
        %426 = vmatprep.subr.bf16.mxu0 0
        %427 = vmatpush1.bf16.xpose.msra.mxu0 0
        %428 = vmatprep.subr.bf16.mxu0 0
        %429 = vmatpush1.bf16.xpose.msra.mxu0 0
        %430 = vmatprep.subr.bf16.mxu0 0
        %431 = vmatpush1.bf16.xpose.msra.mxu0 0
        %432 = vmatprep.subr.bf16.mxu0 0
        %433 = vmatpush1.bf16.xpose.msra.mxu0 0
        %434 = vmatprep.subr.bf16.mxu0 0
        %435 = vmatpush1.bf16.xpose.msra.mxu0 0
        %436 = vmatprep.subr.bf16.mxu0 0
        %437 = vmatpush1.bf16.xpose.msra.mxu0 0
        %438 = vmatprep.subr.bf16.mxu0 0
        %439 = vmatpush1.bf16.xpose.msra.mxu0 0
        %440 = vmatprep.subr.bf16.mxu0 0
        %441 = vmatpush1.bf16.xpose.msra.mxu0 0
        %442 = vmatprep.subr.bf16.mxu0 0
        %443 = vmatpush1.bf16.xpose.msra.mxu0 0
        %444 = vmatprep.subr.bf16.mxu0 0
        %445 = vmatpush1.bf16.xpose.msra.mxu0 0
        %446 = vmatprep.subr.bf16.mxu0 0
        %447 = vmatpush1.bf16.xpose.msra.mxu0 0
        %448 = vmatprep.mubr.bf16.mxu0 0
        %449 = vmatmul.mubr.bf16.gmra.mrb[0].mxu0 %v411
        %v450 = vpop.f32.mrb[0].mxu0
        %v451 = vadd.f32 0.0, %v450
        %v452 = vpop.f32.mrb[0].mxu0
        %v453 = vpop.f32.mrb[0].mxu0
        %v454 = vpop.f32.mrb[0].mxu0
        %455 = vdwg.mxu0
        %456 = vrot.lane.b32.xlu0 %v343, 64
        %v457 = vpop.permute.xlu0 %456
        %v459 = vsel %vm361, %v343, 0
        %v462 = vsel %vm361, %v457, 0
        %464 = vmatprep.subr.bf16.mxu0 0
        %465 = vmatpush1.bf16.xpose.msra.mxu0 %v462
        %466 = vmatprep.subr.bf16.mxu0 0
        %467 = vmatpush1.bf16.xpose.msra.mxu0 0
        %468 = vmatprep.subr.bf16.mxu0 0
        %469 = vmatpush1.bf16.xpose.msra.mxu0 0
        %470 = vmatprep.subr.bf16.mxu0 0
        %471 = vmatpush1.bf16.xpose.msra.mxu0 0
        %472 = vmatprep.subr.bf16.mxu0 0
        %473 = vmatpush1.bf16.xpose.msra.mxu0 0
        %474 = vmatprep.subr.bf16.mxu0 0
        %475 = vmatpush1.bf16.xpose.msra.mxu0 0
        %476 = vmatprep.subr.bf16.mxu0 0
        %477 = vmatpush1.bf16.xpose.msra.mxu0 0
        %478 = vmatprep.subr.bf16.mxu0 0
        %479 = vmatpush1.bf16.xpose.msra.mxu0 0
        %480 = vmatprep.subr.bf16.mxu0 0
        %481 = vmatpush1.bf16.xpose.msra.mxu0 0
        %482 = vmatprep.subr.bf16.mxu0 0
        %483 = vmatpush1.bf16.xpose.msra.mxu0 0
        %484 = vmatprep.subr.bf16.mxu0 0
        %485 = vmatpush1.bf16.xpose.msra.mxu0 0
        %486 = vmatprep.subr.bf16.mxu0 0
        %487 = vmatpush1.bf16.xpose.msra.mxu0 0
        %488 = vmatprep.subr.bf16.mxu0 0
        %489 = vmatpush1.bf16.xpose.msra.mxu0 0
        %490 = vmatprep.subr.bf16.mxu0 0
        %491 = vmatpush1.bf16.xpose.msra.mxu0 0
        %492 = vmatprep.subr.bf16.mxu0 0
        %493 = vmatpush1.bf16.xpose.msra.mxu0 0
        %494 = vmatprep.subr.bf16.mxu0 0
        %495 = vmatpush1.bf16.xpose.msra.mxu0 0
        %496 = vmatprep.mubr.bf16.mxu0 0
        %497 = vmatmul.mubr.bf16.gmra.mrb[0].mxu0 %v459
        %v498 = vpop.f32.mrb[0].mxu0
        %v499 = vadd.f32 0.0, %v498
        %v500 = vpop.f32.mrb[0].mxu0
        %v501 = vpop.f32.mrb[0].mxu0
        %v502 = vpop.f32.mrb[0].mxu0
        %503 = vdwg.mxu0
        %504 = vrot.lane.b32.xlu0 %v345, 64
        %v505 = vpop.permute.xlu0 %504
        %v507 = vsel %vm361, %v345, 0
        %v510 = vsel %vm361, %v505, 0
        %512 = vmatprep.subr.bf16.mxu0 0
        %513 = vmatpush1.bf16.xpose.msra.mxu0 %v510
        %514 = vmatprep.subr.bf16.mxu0 0
        %515 = vmatpush1.bf16.xpose.msra.mxu0 0
        %516 = vmatprep.subr.bf16.mxu0 0
        %517 = vmatpush1.bf16.xpose.msra.mxu0 0
        %518 = vmatprep.subr.bf16.mxu0 0
        %519 = vmatpush1.bf16.xpose.msra.mxu0 0
        %520 = vmatprep.subr.bf16.mxu0 0
        %521 = vmatpush1.bf16.xpose.msra.mxu0 0
        %522 = vmatprep.subr.bf16.mxu0 0
        %523 = vmatpush1.bf16.xpose.msra.mxu0 0
        %524 = vmatprep.subr.bf16.mxu0 0
        %525 = vmatpush1.bf16.xpose.msra.mxu0 0
        %526 = vmatprep.subr.bf16.mxu0 0
        %527 = vmatpush1.bf16.xpose.msra.mxu0 0
        %528 = vmatprep.subr.bf16.mxu0 0
        %529 = vmatpush1.bf16.xpose.msra.mxu0 0
        %530 = vmatprep.subr.bf16.mxu0 0
        %531 = vmatpush1.bf16.xpose.msra.mxu0 0
        %532 = vmatprep.subr.bf16.mxu0 0
        %533 = vmatpush1.bf16.xpose.msra.mxu0 0
        %534 = vmatprep.subr.bf16.mxu0 0
        %535 = vmatpush1.bf16.xpose.msra.mxu0 0
        %536 = vmatprep.subr.bf16.mxu0 0
        %537 = vmatpush1.bf16.xpose.msra.mxu0 0
        %538 = vmatprep.subr.bf16.mxu0 0
        %539 = vmatpush1.bf16.xpose.msra.mxu0 0
        %540 = vmatprep.subr.bf16.mxu0 0
        %541 = vmatpush1.bf16.xpose.msra.mxu0 0
        %542 = vmatprep.subr.bf16.mxu0 0
        %543 = vmatpush1.bf16.xpose.msra.mxu0 0
        %544 = vmatprep.mubr.bf16.mxu0 0
        %545 = vmatmul.mubr.bf16.gmra.mrb[0].mxu0 %v507
        %v546 = vpop.f32.mrb[0].mxu0
        %v547 = vadd.f32 0.0, %v546
        %v548 = vpop.f32.mrb[0].mxu0
        %v549 = vpop.f32.mrb[0].mxu0
        %v550 = vpop.f32.mrb[0].mxu0
        %551 = vdwg.mxu0
        %v552 = vmul.f32 %v403, 0.25
        %v553 = vmul.f32 %v451, 0.25
        %v554 = vmul.f32 %v499, 0.25
        %v555 = vmul.f32 %v547, 0.25
        %v556 = vadd.f32 %v552, %v358
        %v557 = vadd.f32 %v553, %v358
        %v558 = vadd.f32 %v554, %v358
        %v559 = vadd.f32 %v555, %v358
        %vm560 = vcmask 64512
        %v561 = vsel %vm560, %v556, -inf
        %562 = vmax.xlane.f32.xlu0 %v561
        %v563 = vpop.xlane.xlu0 %562
        %v564 = vsel %vm560, %v557, -inf
        %565 = vmax.xlane.f32.xlu0 %v564
        %v566 = vpop.xlane.xlu0 %565
        %v567 = vsel %vm560, %v558, -inf
        %568 = vmax.xlane.f32.xlu0 %v567
        %v569 = vpop.xlane.xlu0 %568
        %v570 = vsel %vm560, %v559, -inf
        %571 = vmax.xlane.f32.xlu0 %v570
        %v572 = vpop.xlane.xlu0 %571
        %v573 = vsub.f32 %v556, %v563
        %v574 = vsub.f32 %v557, %v566
        %v575 = vsub.f32 %v558, %v569
        %v576 = vsub.f32 %v559, %v572
        %v577 = vmul.f32 %v573, 1.442695
        %v578 = vpow.pop %v577
        %v579 = vmul.f32 %v574, 1.442695
        %v580 = vpow.pop %v579
        %v581 = vmul.f32 %v575, 1.442695
        %v582 = vpow.pop %v581
        %v583 = vmul.f32 %v576, 1.442695
        %v584 = vpow.pop %v583
        %v585 = vsel %vm560, %v578, 0.0
        %586 = vadd.xlane.f32.xlu0 %v585
        %v587 = vpop.xlane.xlu0 %586
        %v588 = vsel %vm560, %v580, 0.0
        %589 = vadd.xlane.f32.xlu0 %v588
        %v590 = vpop.xlane.xlu0 %589
        %v591 = vsel %vm560, %v582, 0.0
        %592 = vadd.xlane.f32.xlu0 %v591
        %v593 = vpop.xlane.xlu0 %592
        %v594 = vsel %vm560, %v584, 0.0
        %595 = vadd.xlane.f32.xlu0 %v594
        %v596 = vpop.xlane.xlu0 %595
        %v597 = vrcp.pop %v587
        %v598 = vrcp.pop %v590
        %v599 = vrcp.pop %v593
        %v600 = vrcp.pop %v596
        %v601 = vmul.f32 %v578, %v597
        %v602 = vmul.f32 %v580, %v598
        %v603 = vmul.f32 %v582, %v599
        %v604 = vmul.f32 %v584, %v600
        %v605 = vpack.c.bf16 %v601, %v601
        %v606 = vpack.c.bf16 %v602, %v602
        %v607 = vpack.c.bf16 %v603, %v603
        %v608 = vpack.c.bf16 %v604, %v604
        %v610 = vsel %vm560, %v605, 0
        %vm612 = vcmask 1043456
        %v614 = vsel %vm612, %v338, 0
        %616 = vmatprep.subr.bf16.mxu0 0
        %617 = vmatpush1.bf16.msra.mxu0 %v614
        %618 = vmatprep.subr.bf16.mxu0 0
        %619 = vmatpush1.bf16.msra.mxu0 0
        %620 = vmatprep.subr.bf16.mxu0 0
        %621 = vmatpush1.bf16.msra.mxu0 0
        %622 = vmatprep.subr.bf16.mxu0 0
        %623 = vmatpush1.bf16.msra.mxu0 0
        %624 = vmatprep.subr.bf16.mxu0 0
        %625 = vmatpush1.bf16.msra.mxu0 0
        %626 = vmatprep.subr.bf16.mxu0 0
        %627 = vmatpush1.bf16.msra.mxu0 0
        %628 = vmatprep.subr.bf16.mxu0 0
        %629 = vmatpush1.bf16.msra.mxu0 0
        %630 = vmatprep.subr.bf16.mxu0 0
        %631 = vmatpush1.bf16.msra.mxu0 0
        %632 = vmatprep.subr.bf16.mxu0 0
        %633 = vmatpush1.bf16.msra.mxu0 0
        %634 = vmatprep.subr.bf16.mxu0 0
        %635 = vmatpush1.bf16.msra.mxu0 0
        %636 = vmatprep.subr.bf16.mxu0 0
        %637 = vmatpush1.bf16.msra.mxu0 0
        %638 = vmatprep.subr.bf16.mxu0 0
        %639 = vmatpush1.bf16.msra.mxu0 0
        %640 = vmatprep.subr.bf16.mxu0 0
        %641 = vmatpush1.bf16.msra.mxu0 0
        %642 = vmatprep.subr.bf16.mxu0 0
        %643 = vmatpush1.bf16.msra.mxu0 0
        %644 = vmatprep.subr.bf16.mxu0 0
        %645 = vmatpush1.bf16.msra.mxu0 0
        %646 = vmatprep.subr.bf16.mxu0 0
        %647 = vmatpush1.bf16.msra.mxu0 0
        %648 = vmatprep.mubr.bf16.mxu0 0
        %649 = vmatmul.mubr.bf16.gmra.mrb[0].mxu0 %v610
        %v650 = vpop.f32.mrb[0].mxu0
        %v651 = vadd.f32 0.0, %v650
        %v652 = vpop.f32.mrb[0].mxu0
        %v653 = vpop.f32.mrb[0].mxu0
        %v654 = vpop.f32.mrb[0].mxu0
        %655 = vdwg.mxu0
        %v657 = vsel %vm560, %v606, 0
        %v660 = vsel %vm612, %v348, 0
        %662 = vmatprep.subr.bf16.mxu0 0
        %663 = vmatpush1.bf16.msra.mxu0 %v660
        %664 = vmatprep.subr.bf16.mxu0 0
        %665 = vmatpush1.bf16.msra.mxu0 0
        %666 = vmatprep.subr.bf16.mxu0 0
        %667 = vmatpush1.bf16.msra.mxu0 0
        %668 = vmatprep.subr.bf16.mxu0 0
        %669 = vmatpush1.bf16.msra.mxu0 0
        %670 = vmatprep.subr.bf16.mxu0 0
        %671 = vmatpush1.bf16.msra.mxu0 0
        %672 = vmatprep.subr.bf16.mxu0 0
        %673 = vmatpush1.bf16.msra.mxu0 0
        %674 = vmatprep.subr.bf16.mxu0 0
        %675 = vmatpush1.bf16.msra.mxu0 0
        %676 = vmatprep.subr.bf16.mxu0 0
        %677 = vmatpush1.bf16.msra.mxu0 0
        %678 = vmatprep.subr.bf16.mxu0 0
        %679 = vmatpush1.bf16.msra.mxu0 0
        %680 = vmatprep.subr.bf16.mxu0 0
        %681 = vmatpush1.bf16.msra.mxu0 0
        %682 = vmatprep.subr.bf16.mxu0 0
        %683 = vmatpush1.bf16.msra.mxu0 0
        %684 = vmatprep.subr.bf16.mxu0 0
        %685 = vmatpush1.bf16.msra.mxu0 0
        %686 = vmatprep.subr.bf16.mxu0 0
        %687 = vmatpush1.bf16.msra.mxu0 0
        %688 = vmatprep.subr.bf16.mxu0 0
        %689 = vmatpush1.bf16.msra.mxu0 0
        %690 = vmatprep.subr.bf16.mxu0 0
        %691 = vmatpush1.bf16.msra.mxu0 0
        %692 = vmatprep.subr.bf16.mxu0 0
        %693 = vmatpush1.bf16.msra.mxu0 0
        %694 = vmatprep.mubr.bf16.mxu0 0
        %695 = vmatmul.mubr.bf16.gmra.mrb[0].mxu0 %v657
        %v696 = vpop.f32.mrb[0].mxu0
        %v697 = vadd.f32 0.0, %v696
        %v698 = vpop.f32.mrb[0].mxu0
        %v699 = vpop.f32.mrb[0].mxu0
        %v700 = vpop.f32.mrb[0].mxu0
        %701 = vdwg.mxu0
        %v703 = vsel %vm560, %v607, 0
        %v706 = vsel %vm612, %v350, 0
        %708 = vmatprep.subr.bf16.mxu0 0
        %709 = vmatpush1.bf16.msra.mxu0 %v706
        %710 = vmatprep.subr.bf16.mxu0 0
        %711 = vmatpush1.bf16.msra.mxu0 0
        %712 = vmatprep.subr.bf16.mxu0 0
        %713 = vmatpush1.bf16.msra.mxu0 0
        %714 = vmatprep.subr.bf16.mxu0 0
        %715 = vmatpush1.bf16.msra.mxu0 0
        %716 = vmatprep.subr.bf16.mxu0 0
        %717 = vmatpush1.bf16.msra.mxu0 0
        %718 = vmatprep.subr.bf16.mxu0 0
        %719 = vmatpush1.bf16.msra.mxu0 0
        %720 = vmatprep.subr.bf16.mxu0 0
        %721 = vmatpush1.bf16.msra.mxu0 0
        %722 = vmatprep.subr.bf16.mxu0 0
        %723 = vmatpush1.bf16.msra.mxu0 0
        %724 = vmatprep.subr.bf16.mxu0 0
        %725 = vmatpush1.bf16.msra.mxu0 0
        %726 = vmatprep.subr.bf16.mxu0 0
        %727 = vmatpush1.bf16.msra.mxu0 0
        %728 = vmatprep.subr.bf16.mxu0 0
        %729 = vmatpush1.bf16.msra.mxu0 0
        %730 = vmatprep.subr.bf16.mxu0 0
        %731 = vmatpush1.bf16.msra.mxu0 0
        %732 = vmatprep.subr.bf16.mxu0 0
        %733 = vmatpush1.bf16.msra.mxu0 0
        %734 = vmatprep.subr.bf16.mxu0 0
        %735 = vmatpush1.bf16.msra.mxu0 0
        %736 = vmatprep.subr.bf16.mxu0 0
        %737 = vmatpush1.bf16.msra.mxu0 0
        %738 = vmatprep.subr.bf16.mxu0 0
        %739 = vmatpush1.bf16.msra.mxu0 0
        %740 = vmatprep.mubr.bf16.mxu0 0
        %741 = vmatmul.mubr.bf16.gmra.mrb[0].mxu0 %v703
        %v742 = vpop.f32.mrb[0].mxu0
        %v743 = vadd.f32 0.0, %v742
        %v744 = vpop.f32.mrb[0].mxu0
        %v745 = vpop.f32.mrb[0].mxu0
        %v746 = vpop.f32.mrb[0].mxu0
        %747 = vdwg.mxu0
        %v749 = vsel %vm560, %v608, 0
        %v752 = vsel %vm612, %v352, 0
        %754 = vmatprep.subr.bf16.mxu0 0
        %755 = vmatpush1.bf16.msra.mxu0 %v752
        %756 = vmatprep.subr.bf16.mxu0 0
        %757 = vmatpush1.bf16.msra.mxu0 0
        %758 = vmatprep.subr.bf16.mxu0 0
        %759 = vmatpush1.bf16.msra.mxu0 0
        %760 = vmatprep.subr.bf16.mxu0 0
        %761 = vmatpush1.bf16.msra.mxu0 0
        %762 = vmatprep.subr.bf16.mxu0 0
        %763 = vmatpush1.bf16.msra.mxu0 0
        %764 = vmatprep.subr.bf16.mxu0 0
        %765 = vmatpush1.bf16.msra.mxu0 0
        %766 = vmatprep.subr.bf16.mxu0 0
        %767 = vmatpush1.bf16.msra.mxu0 0
        %768 = vmatprep.subr.bf16.mxu0 0
        %769 = vmatpush1.bf16.msra.mxu0 0
        %770 = vmatprep.subr.bf16.mxu0 0
        %771 = vmatpush1.bf16.msra.mxu0 0
        %772 = vmatprep.subr.bf16.mxu0 0
        %773 = vmatpush1.bf16.msra.mxu0 0
        %774 = vmatprep.subr.bf16.mxu0 0
        %775 = vmatpush1.bf16.msra.mxu0 0
        %776 = vmatprep.subr.bf16.mxu0 0
        %777 = vmatpush1.bf16.msra.mxu0 0
        %778 = vmatprep.subr.bf16.mxu0 0
        %779 = vmatpush1.bf16.msra.mxu0 0
        %780 = vmatprep.subr.bf16.mxu0 0
        %781 = vmatpush1.bf16.msra.mxu0 0
        %782 = vmatprep.subr.bf16.mxu0 0
        %783 = vmatpush1.bf16.msra.mxu0 0
        %784 = vmatprep.subr.bf16.mxu0 0
        %785 = vmatpush1.bf16.msra.mxu0 0
        %786 = vmatprep.mubr.bf16.mxu0 0
        %787 = vmatmul.mubr.bf16.gmra.mrb[0].mxu0 %v749
        %v788 = vpop.f32.mrb[0].mxu0
        %v789 = vadd.f32 0.0, %v788
        %v790 = vpop.f32.mrb[0].mxu0
        %v791 = vpop.f32.mrb[0].mxu0
        %v792 = vpop.f32.mrb[0].mxu0
        %793 = vdwg.mxu0
        %v794 = vpack.c.bf16 %v651, %v651
        %v795 = vpack.c.bf16 %v697, %v697
        %v796 = vpack.c.bf16 %v743, %v743
        %v797 = vpack.c.bf16 %v789, %v789
        %799 = vrot.lane.b32.xlu0 %v795, 16
        %v800 = vpop.permute.xlu0 %799
        %802 = vrot.lane.b32.xlu0 %v796, 32
        %v803 = vpop.permute.xlu0 %802
        %805 = vrot.lane.b32.xlu0 %v797, 48
        %v806 = vpop.permute.xlu0 %805
        %v809 = vsel %vm361, %v794, %v800
        %vm810 = vcmask 261120
        %v812 = vsel %vm810, %v809, %v803
        %vm813 = vcmask 392192
        %v815 = vsel %vm813, %v812, %v806
        %v816 = vld [vmem:[#allocation7] sm:$0xf]
        %v817 = vld [vmem:[#allocation7 + $0x4] sm:$0xf]
        %v818 = vld [vmem:[#allocation7 + $0x8] sm:$0xf]
        %v819 = vld [vmem:[#allocation7 + $0xc] sm:$0xf]
        %v820 = vld [vmem:[#allocation7 + $0x10] sm:$0xf]
        %v821 = vld [vmem:[#allocation7 + $0x14] sm:$0xf]
        %v822 = vld [vmem:[#allocation7 + $0x18] sm:$0xf]
        %v823 = vld [vmem:[#allocation7 + $0x1c] sm:$0xf]
        %v824 = vld [vmem:[%s3] sm:$0x1]
        %v826 = vlaneseq
        %v827 = vshrl.u32 %v826, 7
        %v828 = vsub.s32 0, %v827
        %v829 = vrot.slane %v824, %v828
        %v839 = vunpack.c.l.b16 %v816
        %v840 = vunpack.c.l.b16 %v817
        %v841 = vunpack.c.l.b16 %v818
        %v842 = vunpack.c.l.b16 %v819
        %v843 = vunpack.c.l.b16 %v820
        %v844 = vunpack.c.l.b16 %v821
        %v845 = vunpack.c.l.b16 %v822
        %v846 = vunpack.c.l.b16 %v823
        %v847 = vpack.c.b16 %v840, %v839
        %v848 = vpack.c.b16 %v842, %v841
        %v849 = vpack.c.b16 %v844, %v843
        %v850 = vpack.c.b16 %v846, %v845
        %v855 = vsel %vm292, %v815, 0
        %857 = vmatprep.subr.bf16.mxu0 0
        %858 = vmatpush1.bf16.msra.mxu0 %v847
        %859 = vmatprep.subr.bf16.mxu0 0
        %860 = vmatpush1.bf16.msra.mxu0 %v848
        %861 = vmatprep.subr.bf16.mxu0 0
        %862 = vmatpush1.bf16.msra.mxu0 %v849
        %863 = vmatprep.subr.bf16.mxu0 0
        %864 = vmatpush1.bf16.msra.mxu0 %v850
        %865 = vmatprep.subr.bf16.mxu0 0
        %866 = vmatpush1.bf16.msra.mxu0 0
        %867 = vmatprep.subr.bf16.mxu0 0
        %868 = vmatpush1.bf16.msra.mxu0 0
        %869 = vmatprep.subr.bf16.mxu0 0
        %870 = vmatpush1.bf16.msra.mxu0 0
        %871 = vmatprep.subr.bf16.mxu0 0
        %872 = vmatpush1.bf16.msra.mxu0 0
        %873 = vmatprep.subr.bf16.mxu0 0
        %874 = vmatpush1.bf16.msra.mxu0 0
        %875 = vmatprep.subr.bf16.mxu0 0
        %876 = vmatpush1.bf16.msra.mxu0 0
        %877 = vmatprep.subr.bf16.mxu0 0
        %878 = vmatpush1.bf16.msra.mxu0 0
        %879 = vmatprep.subr.bf16.mxu0 0
        %880 = vmatpush1.bf16.msra.mxu0 0
        %881 = vmatprep.subr.bf16.mxu0 0
        %882 = vmatpush1.bf16.msra.mxu0 0
        %883 = vmatprep.subr.bf16.mxu0 0
        %884 = vmatpush1.bf16.msra.mxu0 0
        %885 = vmatprep.subr.bf16.mxu0 0
        %886 = vmatpush1.bf16.msra.mxu0 0
        %887 = vmatprep.subr.bf16.mxu0 0
        %888 = vmatpush1.bf16.msra.mxu0 0
        %889 = vmatprep.mubr.bf16.mxu0 0
        %890 = vmatmul.mubr.bf16.gmra.mrb[0].mxu0 %v855
        %v891 = vpop.f32.mrb[0].mxu0
        %v892 = vadd.f32 %v829, %v891
        %v893 = vpop.f32.mrb[0].mxu0
        %v894 = vpop.f32.mrb[0].mxu0
        %v895 = vpop.f32.mrb[0].mxu0
        %896 = vdwg.mxu0
        %897 = vst.msk [vmem:[%s241] sm:$0xff] %vm292, %v892
        %s898 = sand.u32 %s119, 1
        %s899 = scalar_lea.sflag [#allocation4], %s898
        %s900 = sand.u32 %s119, 1
        %s901 = smul.addr %s900, 8
        %s902 = scalar_lea.vmem [#allocation8], %s901
        // Predicated region
        $region49: #{tpu_custom_call.1} parent=35 // pred_check
          %p903 = pneg %p129
        $region50: #{tpu_custom_call.1} parent=35 // pred_check_branch
          %905 = sbr.rel (%p903) target = $region52
        $region51: #{tpu_custom_call.1} parent=35 // pred_region
          %s907 = ssub.s32 128, 128
          %908 = vsyncadd %s899, %s907
          %s909 = smul.addr %s22, 128
          %s910 = scalar_lea.hbm %s4, %s909
          %s912 = sshll.u32 %s902, 4
          %s913 = int_to_ptr.vmem [resolvable:$true] %s912
          %915 = dma.vmem_to_hbm [thread:$0]  %s913, 128, %s910, %s899
        $region52: #{tpu_custom_call.1} parent=35 // pred_fallthru
          _
      $region36: #{tpu_custom_call.1} parent=5 // pred_fallthru
        _
      %p916 = scmp.le.s32.totalorder 2, %s17
      // Predicated region
      $region53: #{tpu_custom_call.1} parent=5 // pred_check
        %p917 = pneg %p916
      $region54: #{tpu_custom_call.1} parent=5 // pred_check_branch
        %919 = sbr.rel (%p917) target = $region56
      $region55: #{tpu_custom_call.1} parent=5 // pred_region
        %s920 = ssub.s32 %s17, 2
        // Predicated region
        $region57: #{tpu_custom_call.1} parent=55 // pred_check
          %p921 = pneg %p135
        $region58: #{tpu_custom_call.1} parent=55 // pred_check_branch
          %923 = sbr.rel (%p921) target = $region60
        $region59: #{tpu_custom_call.1} parent=55 // pred_region
          %s924 = sand.u32 %s120, 1
          %s925 = scalar_lea.sflag [#allocation4], %s924
          %s926 = sand.u32 %s120, 1
          %s927 = smul.addr %s926, 8
          %s928 = scalar_lea.vmem [#allocation8], %s927
          %929 = dma.done %s925, 128
        $region60: #{tpu_custom_call.1} parent=55 // pred_fallthru
          _
      $region56: #{tpu_custom_call.1} parent=5 // pred_fallthru
        _
    $region6: #{tpu_custom_call.1} parent=1 // loop_footer
      %s21 = sadd.s32 1, %s17
    $region7: #{tpu_custom_call.1} parent=1 // loop_footer_branch
      %16 = sbr.rel target = $region3
    $region8: #{tpu_custom_call.1} parent=1 // loop_exit
      _
    %930 = vsyncpa [#allocation3], 1
    %s931 = scalar_lea.sflag [#allocation3], 1
    %932 = vsyncpa %s931, 1
    %933 = vsyncpa [#allocation6], 1
    %934 = vsyncpa [#allocation4], 1
    %s935 = scalar_lea.sflag [#allocation4], 1
    %936 = vsyncpa %s935, 1

</llo_original>
